<compile_context>
chip_gen: v7x
topology: tpu7x:2x2x1
jax: 0.10.0
libtpu: 0.0.40
codegen_flags: <defaults>
</compile_context>

<pallas_src>
import functools

import jax
import jax.numpy as jnp
from jax.experimental import pallas as pl
from jax.experimental.pallas import tpu as pltpu


def _round_up(v: int, m: int) -> int:
    return ((v + m - 1) // m) * m


def _coarse_grain_kernel(x_ref, w_ref, o_ref, acc_ref, *, tk, valid_d):
    """One (tm, tk) tile of x against the resident weight.

    x_ref:   (tm, tk)  rows of the flattened input (may be a partial boundary
                       block in either dim; out-of-range lanes hold garbage)
    w_ref:   (1, W)    weight, VMEM-resident across the grid (W == tk or gk*tk)
    o_ref:   (1, tm)   lane-dense output slice for this batch tile
    acc_ref: (1, tm)   f32 accumulator, resident across the reduction axis
    """
    k = pl.program_id(1)

    @pl.when(k == 0)
    def _init():
        acc_ref[...] = jnp.zeros_like(acc_ref)

    # Current reduction slice of the resident weight (no per-step weight DMA).
    if w_ref.shape[-1] == tk:                 # single block / per-step block
        w = w_ref[...]
    else:                                     # resident weight; tk % 128 == 0
        w = w_ref[:, pl.ds(pl.multiple_of(k * tk, 128), tk)]

    x = x_ref[...]
    # Ragged last reduction block: columns >= D hold unspecified boundary data
    # (possibly NaN/Inf) and must not reach the MXU.  Static no-op when D % tk == 0.
    if valid_d % tk:
        col = k * tk + jax.lax.broadcasted_iota(jnp.int32, (1, tk), 1)
        x = jnp.where(col < valid_d, x, 0)

    # (1,tk) . (tm,tk) contracting the last dims -> (1,tm): lane-dense result;
    # the x tile feeds the MXU via the transposed-rhs path (no materialized
    # transpose of the tile).
    acc_ref[...] += jax.lax.dot_general(
        w, x,
        dimension_numbers=(((1,), (1,)), ((), ())),
        preferred_element_type=jnp.float32,
    )

    @pl.when(k == pl.num_programs(1) - 1)
    def _finalize():
        o_ref[...] = acc_ref[...].astype(o_ref.dtype)


def coarse_grain(fine_grained: jax.Array, weight: jax.Array, *,
                 tm: int = 2048, tk: int = 1024,
                 min_pallas_elems: int = 1 << 19) -> jax.Array:
    """fine_grained: (B, D), weight: (1, D)  ->  (B, 1)   (same as nn.Linear)."""
    B, D = fine_grained.shape
    assert weight.shape == (1, D), weight.shape
    out_dtype = fine_grained.dtype
    itemsize = jnp.dtype(fine_grained.dtype).itemsize

    # Tiny problems: pallas_call fixed + per-grid-step overhead exceeds the
    # (purely HBM-bound) useful work; XLA's fused matvec is faster there.
    if B * D < min_pallas_elems:
        return fine_grained @ weight.T

    # ---- reduction (K) tile -------------------------------------------------
    tk_max = max(128, _round_up(min(tk, 4096), 128))
    if D <= tk_max:
        tk, gk = D, 1                       # whole D in one (full-dim) block
    else:
        tk = tk_max                         # multiple of 128, < D
        gk = pl.cdiv(D, tk)                 # ragged last block -> masked in kernel

    # ---- batch (M) tile: lane/sublane aligned, VMEM-budgeted ------------------
    X_DBUF_BUDGET = 32 << 20                # double-buffered x tile budget
    tm_cap = max(128, _round_up(min(tm, 8192), 128))
    by_budget = max(128, (X_DBUF_BUDGET // (2 * tk * itemsize)) // 128 * 128)
    tm_cap = min(tm_cap, by_budget)
    if B >= 256:                            # v7x: keep both TensorCores busy
        tm_cap = min(tm_cap, _round_up(pl.cdiv(B, 2), 128))
    if B <= tm_cap:
        tm, gb = B, 1                       # single full-dim batch block
    else:
        tm, gb = tm_cap, pl.cdiv(B, tm_cap)   # tm is a multiple of 128 here

    # ---- pad only the tiny weight (x streams from HBM in place) --------------
    W = gk * tk
    w = weight if W == D else jnp.pad(weight, ((0, 0), (0, W - D)))

    # Keep the weight fully resident unless it is unusually large.
    if 2 * W * itemsize <= (4 << 20):
        w_block_w = W
        w_spec = pl.BlockSpec((1, W), lambda i, k: (0, 0))       # resident
    else:
        w_block_w = tk
        w_spec = pl.BlockSpec((1, tk), lambda i, k: (0, k))      # per-step slice

    vmem_need = (2 * tm * tk + 2 * w_block_w + 2 * tm) * itemsize + tm * 4
    vmem_limit = int(min(48 << 20, max(32 << 20, vmem_need + (4 << 20))))

    kernel = functools.partial(_coarse_grain_kernel, tk=tk, valid_d=D)

    out = pl.pallas_call(
        kernel,
        out_shape=jax.ShapeDtypeStruct((1, B), out_dtype),
        grid_spec=pltpu.PrefetchScalarGridSpec(
            num_scalar_prefetch=0,
            grid=(gb, gk),                                  # batch, reduction last
            in_specs=[
                pl.BlockSpec((tm, tk), lambda i, k: (i, k)),    # x tile (streamed)
                w_spec,                                         # weight
            ],
            out_specs=pl.BlockSpec((1, tm), lambda i, k: (0, i)),   # lane-dense
            scratch_shapes=[pltpu.VMEM((1, tm), jnp.float32)],
        ),
        compiler_params=pltpu.CompilerParams(
            dimension_semantics=("parallel", "arbitrary"),
            vmem_limit_bytes=vmem_limit,
        ),
        cost_estimate=pl.CostEstimate(
            flops=2 * B * D,
            bytes_accessed=itemsize * (B * D + D + B),
            transcendentals=0,
        ),
    )(fine_grained, w)

    # (1, B) lane-dense slab -> (B, 1)  (same memory order; metadata reshape)
    return out.reshape(B, 1)


if __name__ == "__main__":
    key = jax.random.PRNGKey(0)
    k1, k2, k3, k4 = jax.random.split(key, 4)

    def make_inputs(kx, kw, batch, x_dim):
        x = jax.random.normal(kx, (batch, x_dim), dtype=jnp.float32)
        # PyTorch nn.Linear default init: U(-1/sqrt(in_features), +1/sqrt(in_features))
        bound = 1.0 / (x_dim ** 0.5)
        w = jax.random.uniform(kw, (1, x_dim), dtype=jnp.float32,
                               minval=-bound, maxval=bound)
        return x, w

    def check(x, w, out, atol):
        ref = x @ w.T
        assert out.shape == (x.shape[0], 1), out.shape
        assert jnp.allclose(out, ref, atol=atol, rtol=atol), "mismatch vs reference"

    # 1) Tiny, module-consistent size (flattened 2x2-model input): XLA fast path.
    x_tiny, w_tiny = make_inputs(k1, k2, batch=8, x_dim=32)
    out_tiny = jax.block_until_ready(coarse_grain(x_tiny, w_tiny))
    check(x_tiny, w_tiny, out_tiny, atol=1e-5)

    # 2) Ragged in both dims (forced Pallas): gb=2 with a 244-row tail tile,
    #    gk=2 with D % tk = 128 -> in-kernel column mask, padded resident weight.
    x_r, w_r = make_inputs(k3, k4, batch=500, x_dim=384)
    out_r = jax.block_until_ready(
        coarse_grain(x_r, w_r, tm=256, tk=256, min_pallas_elems=0))
    check(x_r, w_r, out_r, atol=2e-4)

    # 3) Single batch block (gb=1, tm=B full-dim block), ragged reduction
    #    (D=2000, tk=1024 -> gk=2, 976-column valid tail), forced Pallas.
    x_g, w_g = make_inputs(k2, k1, batch=128, x_dim=2000)
    out_g = jax.block_until_ready(coarse_grain(x_g, w_g, min_pallas_elems=0))
    check(x_g, w_g, out_g, atol=2e-4)

    # 4) Evenly divisible multi-k reduction (gk=4, no mask), >=2 batch blocks.
    x_e, w_e = make_inputs(k4, k3, batch=512, x_dim=2048)
    out_e = jax.block_until_ready(coarse_grain(x_e, w_e, tk=512))
    check(x_e, w_e, out_e, atol=2e-4)

    # 5) Default tile sizes, Pallas path via default threshold: D=640 -> gk=1
    #    (no mask, unpadded resident weight), B=1024 -> tm=512, gb=2.
    x_big, w_big = make_inputs(k1, k4, batch=1024, x_dim=640)
    out_big = jax.block_until_ready(coarse_grain(x_big, w_big))
    check(x_big, w_big, out_big, atol=2e-4)

    print("KERNEL_OK")
</pallas_src>

<mosaic_0001>
module attributes {stable_mosaic.version = 11 : i64} {
  func.func @_coarse_grain_kernel(%arg0: i32, %arg1: i32, %arg2: memref<256x256xf32, #tpu.memory_space<vmem>>, %arg3: memref<1x512xf32, #tpu.memory_space<vmem>>, %arg4: memref<1x256xf32, #tpu.memory_space<vmem>>, %arg5: memref<1x256xf32, #tpu.memory_space<vmem>>) attributes {dimension_semantics = [#tpu.dimension_semantics<parallel>, #tpu.dimension_semantics<arbitrary>], iteration_bounds = array<i64: 2, 2>, scalar_prefetch = 0 : i64, scratch_operands = 1 : i64, tpu.core_type = #tpu.core_type<tc>, window_params = [{transform_indices = @transform_0, window_bounds = array<i64: 256, 256>}, {pipeline_mode = #tpu.pipeline_mode<synchronous>, transform_indices = @transform_1, window_bounds = array<i64: 1, 512>}, {transform_indices = @transform_2, window_bounds = array<i64: 1, 256>}]} {
    %c0_i32 = arith.constant 0 : i32
    %0 = arith.cmpi eq, %arg1, %c0_i32 : i32
    %1 = arith.extui %0 : i1 to i32
    %c0_i32_0 = arith.constant 0 : i32
    %2 = arith.cmpi ne, %1, %c0_i32_0 : i32
    scf.if %2 {
      %cst_10 = arith.constant 0.000000e+00 : f32
      %26 = vector.broadcast %cst_10 : f32 to vector<1x256xf32>
      %c0_11 = arith.constant 0 : index
      %c0_12 = arith.constant 0 : index
      %27 = vector.load %arg5[%c0_11, %c0_12] : memref<1x256xf32, #tpu.memory_space<vmem>>, vector<1x256xf32>
      tpu.vector_store %arg5[%c0_11, %c0_12], %26 {strides = array<i32>} : memref<1x256xf32, #tpu.memory_space<vmem>>, vector<1x256xf32>,
    } else {
    }
    %c256_i32 = arith.constant 256 : i32
    %3 = arith.muli %arg1, %c256_i32 : i32
    %4 = tpu.assume_multiple %3, 128 : i32
    %c0 = arith.constant 0 : index
    %5 = arith.index_cast %4 : i32 to index
    %6 = vector.load %arg3[%c0, %5] : memref<1x512xf32, #tpu.memory_space<vmem>>, vector<1x256xf32>
    %c0_1 = arith.constant 0 : index
    %c0_2 = arith.constant 0 : index
    %7 = vector.load %arg2[%c0_1, %c0_2] : memref<256x256xf32, #tpu.memory_space<vmem>>, vector<256x256xf32>
    %c256_i32_3 = arith.constant 256 : i32
    %8 = arith.muli %arg1, %c256_i32_3 : i32
    %9 = tpu.iota {dimensions = array<i32: 1>} : vector<1x256xi32>
    %10 = vector.broadcast %8 : i32 to vector<1x256xi32>
    %11 = arith.addi %10, %9 : vector<1x256xi32>
    %c384_i32 = arith.constant 384 : i32
    %12 = vector.broadcast %c384_i32 : i32 to vector<1x256xi32>
    %13 = arith.cmpi slt, %11, %12 : vector<1x256xi32>
    %c0_i32_4 = arith.constant 0 : i32
    %14 = arith.sitofp %c0_i32_4 : i32 to f32
    %15 = vector.shape_cast %13 : vector<1x256xi1> to vector<1x256xi1>
    %16 = vector.broadcast %15 : vector<1x256xi1> to vector<256x256xi1>
    %17 = vector.broadcast %14 : f32 to vector<256x256xf32>
    %18 = arith.select %16, %7, %17 : vector<256x256xi1>, vector<256x256xf32>
    %c0_5 = arith.constant 0 : index
    %c0_6 = arith.constant 0 : index
    %19 = vector.load %arg5[%c0_5, %c0_6] : memref<1x256xf32, #tpu.memory_space<vmem>>, vector<1x256xf32>
    %cst = arith.constant dense<0.000000e+00> : vector<1x256xf32>
    %20 = tpu.matmul %6, %18, %cst {dimension_numbers = #tpu.dot_dimension_numbers<[1], [1], [0], [0], [0, 0, 1, 0], [], []>} : vector<1x256xf32>, vector<256x256xf32>, vector<1x256xf32> -> vector<1x256xf32>
    %21 = arith.addf %19, %20 : vector<1x256xf32>
    %c0_7 = arith.constant 0 : index
    %c0_8 = arith.constant 0 : index
    %22 = vector.load %arg5[%c0_7, %c0_8] : memref<1x256xf32, #tpu.memory_space<vmem>>, vector<1x256xf32>
    tpu.vector_store %arg5[%c0_7, %c0_8], %21 {strides = array<i32>} : memref<1x256xf32, #tpu.memory_space<vmem>>, vector<1x256xf32>,
    %c1_i32 = arith.constant 1 : i32
    %23 = arith.cmpi eq, %arg1, %c1_i32 : i32
    %24 = arith.extui %23 : i1 to i32
    %c0_i32_9 = arith.constant 0 : i32
    %25 = arith.cmpi ne, %24, %c0_i32_9 : i32
    scf.if %25 {
      %c0_10 = arith.constant 0 : index
      %c0_11 = arith.constant 0 : index
      %26 = vector.load %arg5[%c0_10, %c0_11] : memref<1x256xf32, #tpu.memory_space<vmem>>, vector<1x256xf32>
      %c0_12 = arith.constant 0 : index
      %c0_13 = arith.constant 0 : index
      %27 = vector.load %arg4[%c0_12, %c0_13] : memref<1x256xf32, #tpu.memory_space<vmem>>, vector<1x256xf32>
      tpu.vector_store %arg4[%c0_12, %c0_13], %26 {strides = array<i32>} : memref<1x256xf32, #tpu.memory_space<vmem>>, vector<1x256xf32>,
    } else {
    }
    return
  }
  func.func @transform_0(%arg0: i32, %arg1: i32) -> (i32, i32) {
    %c0_i32 = arith.constant 0 : i32
    return %arg0, %arg1 : i32, i32
  }
  func.func @transform_1(%arg0: i32, %arg1: i32) -> (i32, i32) {
    %c0_i32 = arith.constant 0 : i32
    %c0_i32_0 = arith.constant 0 : i32
    %c0_i32_1 = arith.constant 0 : i32
    return %c0_i32, %c0_i32_0 : i32, i32
  }
  func.func @transform_2(%arg0: i32, %arg1: i32) -> (i32, i32) {
    %c0_i32 = arith.constant 0 : i32
    %c0_i32_0 = arith.constant 0 : i32
    return %c0_i32, %arg0 : i32, i32
  }
}

</mosaic_0001>

<llo_original>
// kernel: tpu_custom_call.1
$region0: #{tpu_custom_call.1}
  #allocation0 [shape = 'u32[]', space=smem, size = 0x4, offset = 0x4, fixed_abs, tag = 'smem constant byte address 0x4 - core index']
  #allocation1 [shape = 'u32[144,128]{1,0:T(1,128)}', space=vmem, size = 0x12000, scoped, tag = 'internal scratch']
  #allocation2 [shape = 'f32[1,256]{1,0:T(1,128)}', space=vmem, size = 0x400, scoped, tag = 'scratch operand']
  %s0 = inlined_call_operand.hbm [shape: f32[500,384], index: 0, kind: input, shape index: {}]
  %s1 = inlined_call_operand.hbm [shape: f32[1,512], index: 1, kind: input, shape index: {}]
  %s2 = inlined_call_operand.hbm [shape: f32[1,500], index: 2, kind: output, shape index: {}]
  %s3 = sld [smem:[#allocation0]]
  $region57: #{tpu_custom_call.1} parent=0
    _
  %s5 = ssub.s32 1, %s3
  %s6 = scalar_select 0, %s5, %s3
  $region1: #{tpu_custom_call.1} parent=0
    #allocation3 [shape = 'u8[524288]{0}', space=vmem, size = 0x80000, scoped, tag = 'input window, operand 0']
    #allocation4 [shape = 's32[2]{0}', space=sflag, size = 0x8, scoped, tag = 'scoped memory for tpu_custom_call.1']
    #allocation5 [shape = 's32[2]{0}', space=sflag, size = 0x8, scoped, tag = 'scoped memory for tpu_custom_call.1']
    #allocation6 [shape = 'u8[2048]{0}', space=vmem, size = 0x800, scoped, tag = 'input window, operand 1, single buffered']
    #allocation7 [shape = 's32[1]{0}', space=sflag, size = 0x4, scoped, tag = 'scoped memory for tpu_custom_call.1']
    #allocation8 [shape = 'u8[2048]{0}', space=vmem, size = 0x800, scoped, tag = 'output window, operand 0']
    %7 = vsyncpa [#allocation4], 0
    %s8 = scalar_lea.sflag [#allocation4], 1
    %9 = vsyncpa %s8, 0
    %10 = vsyncpa [#allocation7], 0
    %11 = vsyncpa [#allocation5], 0
    %s12 = scalar_lea.sflag [#allocation5], 1
    %13 = vsyncpa %s12, 0
    loop: start=0, step=1, limit=6
    $region2: #{tpu_custom_call.1} parent=1 // loop_pre_header
      _
    $region3: #{tpu_custom_call.1} parent=1 // loop_header
      %s15 = sphi 0, %s19
      %p16 = scmp.ge.s32.totalorder %s15, 6
      %s22 = sphi 0, %s34
      %s23 = sphi 0, %s30
      %s24 = sphi 0, %s22
      %s25 = sphi 0, %s23
      %s26 = sphi 0, %s24
      %s27 = sphi 0, %s25
      %s39 = sphi 0, %s41
      %s42 = sphi 0, %s39
      %s43 = sphi 0, %s42
      %s59 = sphi 0, %s43
      %s63 = sphi 0, %s63
      %s65 = sphi 0, %s63
      %s66 = sphi 0, %s65
      %s80 = sphi 0, %s66
      %s86 = sphi 0, %s88
      %s89 = sphi 0, %s86
      %s90 = sphi 0, %s89
      %s106 = sphi 0, %s90
    $region4: #{tpu_custom_call.1} parent=1 // loop_header_branch
      %18 = sbr.rel (%p16) target = $region8
    $region5: #{tpu_custom_call.1} parent=1 // loop_body
      %s20 = ssub.s32 %s15, 1
      %s21 = ssub.s32 %s15, 2
      %s28 = sadd.s32 1, %s23
      %p29 = scmp.ge.s32.totalorder %s28, 2
      %s30 = scalar_select %p29, 0, %s28
      %s31 = sadd.s32 1, %s22
      %s32 = scalar_select %p29, %s31, %s22
      %p33 = scmp.ge.s32.totalorder %s32, 2
      %s34 = scalar_select %p33, 0, %s32
      %s35 = ssub.s32 %s22, %s34
      %s36 = ssub.s32 %s23, %s30
      %s37 = sor.u32 %s35, %s36
      %p38 = scmp.eq.s32.totalorder %s37, 0
      %s40 = sadd.s32 %s39, 1
      %s41 = scalar_select %p38, %s39, %s40
      %p44 = pneg %p38
      %p45 = scmp.eq.s32.totalorder %s15, 3
      %p46 = por %p44, %p45
      %p47 = scmp.ne.s32.totalorder %s39, %s42
      %p48 = scmp.eq.s32.totalorder %s15, 0
      %p49 = por %p47, %p48
      %p50 = scmp.ne.s32.totalorder %s39, %s42
      %p51 = scmp.eq.s32.totalorder %s20, 3
      %p52 = por %p50, %p51
      %p53 = scmp.ne.s32.totalorder %s42, %s43
      %p54 = scmp.eq.s32.totalorder %s20, 0
      %p55 = por %p53, %p54
      %p56 = scmp.ne.s32.totalorder %s42, %s43
      %p57 = scmp.eq.s32.totalorder %s21, 3
      %p58 = por %p56, %p57
      %p60 = scmp.ne.s32.totalorder %s43, %s59
      %p61 = scmp.eq.s32.totalorder %s21, 0
      %p62 = por %p60, %p61
      %s64 = sadd.s32 %s63, 1
      %p67 = scmp.eq.s32.totalorder %s15, 3
      %p68 = scmp.ne.s32.totalorder %s63, %s65
      %p69 = scmp.eq.s32.totalorder %s15, 0
      %p70 = por %p68, %p69
      %p71 = scmp.ne.s32.totalorder %s63, %s65
      %p72 = scmp.eq.s32.totalorder %s20, 3
      %p73 = por %p71, %p72
      %p74 = scmp.ne.s32.totalorder %s65, %s66
      %p75 = scmp.eq.s32.totalorder %s20, 0
      %p76 = por %p74, %p75
      %p77 = scmp.ne.s32.totalorder %s65, %s66
      %p78 = scmp.eq.s32.totalorder %s21, 3
      %p79 = por %p77, %p78
      %p81 = scmp.ne.s32.totalorder %s66, %s80
      %p82 = scmp.eq.s32.totalorder %s21, 0
      %p83 = por %p81, %p82
      %s84 = ssub.s32 %s22, %s34
      %p85 = scmp.eq.s32.totalorder %s84, 0
      %s87 = sadd.s32 %s86, 1
      %s88 = scalar_select %p85, %s86, %s87
      %p91 = pneg %p85
      %p92 = scmp.eq.s32.totalorder %s15, 3
      %p93 = por %p91, %p92
      %p94 = scmp.ne.s32.totalorder %s86, %s89
      %p95 = scmp.eq.s32.totalorder %s15, 0
      %p96 = por %p94, %p95
      %p97 = scmp.ne.s32.totalorder %s86, %s89
      %p98 = scmp.eq.s32.totalorder %s20, 3
      %p99 = por %p97, %p98
      %p100 = scmp.ne.s32.totalorder %s89, %s90
      %p101 = scmp.eq.s32.totalorder %s20, 0
      %p102 = por %p100, %p101
      %p103 = scmp.ne.s32.totalorder %s89, %s90
      %p104 = scmp.eq.s32.totalorder %s21, 3
      %p105 = por %p103, %p104
      %p107 = scmp.ne.s32.totalorder %s90, %s106
      %p108 = scmp.eq.s32.totalorder %s21, 0
      %p109 = por %p107, %p108
      %p110 = scmp.le.s32.totalorder 1, %s15
      %p111 = scmp.lt.s32.totalorder %s15, 5
      %p112 = pnand %p110, %p111
      %p113 = pneg %p112
      // Predicated region
      $region9: #{tpu_custom_call.1} parent=5 // pred_check
        _
      $region10: #{tpu_custom_call.1} parent=5 // pred_check_branch
        %115 = sbr.rel (%p112) target = $region12
      $region11: #{tpu_custom_call.1} parent=5 // pred_region
        %s116 = ssub.s32 %s15, 1
        // Predicated region
        $region13: #{tpu_custom_call.1} parent=11 // pred_check
          %p117 = pneg %p76
        $region14: #{tpu_custom_call.1} parent=11 // pred_check_branch
          %119 = sbr.rel (%p117) target = $region16
        $region15: #{tpu_custom_call.1} parent=11 // pred_region
          %s121 = ssub.s32 64, 64
          %122 = vsyncadd [#allocation7], %s121
          %s124 = sshll.u32 [#allocation6], 4
          %s125 = int_to_ptr.vmem [resolvable:$true] %s124
          %127 = dma.hbm_to_vmem [thread:$0]  %s1, 64, %s125, [#allocation7]
        $region16: #{tpu_custom_call.1} parent=11 // pred_fallthru
          _
      $region12: #{tpu_custom_call.1} parent=5 // pred_fallthru
        _
      %p128 = scmp.lt.s32.totalorder %s15, 4
      // Predicated region
      $region17: #{tpu_custom_call.1} parent=5 // pred_check
        %p129 = pneg %p128
      $region18: #{tpu_custom_call.1} parent=5 // pred_check_branch
        %131 = sbr.rel (%p129) target = $region20
      $region19: #{tpu_custom_call.1} parent=5 // pred_region
        // Predicated region
        $region21: #{tpu_custom_call.1} parent=19 // pred_check
          %p132 = pneg %p49
        $region22: #{tpu_custom_call.1} parent=19 // pred_check_branch
          %134 = sbr.rel (%p132) target = $region24
        $region23: #{tpu_custom_call.1} parent=19 // pred_region
          %s135 = sand.u32 %s39, 1
          %s136 = scalar_lea.sflag [#allocation4], %s135
          %s137 = sand.u32 %s39, 1
          %s138 = smul.addr %s137, 512
          %s139 = scalar_lea.vmem [#allocation3], %s138
          %s140 = smul.u32 32, %s22
          %s141 = smul.u32 2, %s23
          %s142 = ssub.s32 63, %s140
          %p143 = scmp.lt.s32.totalorder %s142, 32
          %s144 = scalar_select %p143, %s142, 32
          %s145 = smul.u32 128, %s144
          %s146 = ssub.s32 3, %s141
          %p147 = scmp.lt.s32.totalorder %s146, 2
          %s148 = scalar_select %p147, %s146, 2
          %s149 = smul.u32 %s145, %s148
          %s151 = ssub.s32 8192, %s149
          %152 = vsyncadd %s136, %s151
          %p153 = scmp.ne.s32.totalorder 0, %s149
          %s154 = smul.addr %s140, 3
          %s155 = sadd.s32 %s141, %s154
          %s156 = smul.addr %s155, 128
          %s157 = scalar_lea.hbm %s0, %s156
          %s158 = smul.u32 %s148, 8
          %s159 = smul.u32 %s158, %s144
          %s160 = sshll.u32 %s139, 4
          %s161 = int_to_ptr.vmem [resolvable:$true] %s160
          %s162 = sshll.u32 %s159, 4
          %166 = dma.hbm_to_vmem [thread:$0]  (%p153), %s157, %s162, %s161, %s136, 384, 256, %s158
        $region24: #{tpu_custom_call.1} parent=19 // pred_fallthru
          _
      $region20: #{tpu_custom_call.1} parent=5 // pred_fallthru
        _
      %p167 = scmp.le.s32.totalorder 1, %s15
      %p168 = scmp.lt.s32.totalorder %s15, 5
      %p169 = pnand %p167, %p168
      %p170 = pneg %p169
      // Predicated region
      $region25: #{tpu_custom_call.1} parent=5 // pred_check
        _
      $region26: #{tpu_custom_call.1} parent=5 // pred_check_branch
        %172 = sbr.rel (%p169) target = $region28
      $region27: #{tpu_custom_call.1} parent=5 // pred_region
        %s173 = ssub.s32 %s15, 1
        %s174 = sand.u32 %s42, 1
        %s175 = scalar_lea.sflag [#allocation4], %s174
        %s176 = sand.u32 %s42, 1
        %s177 = smul.addr %s176, 512
        %s178 = scalar_lea.vmem [#allocation3], %s177
        // Predicated region
        $region29: #{tpu_custom_call.1} parent=27 // pred_check
          %p179 = pneg %p55
        $region30: #{tpu_custom_call.1} parent=27 // pred_check_branch
          %181 = sbr.rel (%p179) target = $region32
        $region31: #{tpu_custom_call.1} parent=27 // pred_region
          %182 = dma.done %s175, 8192
        $region32: #{tpu_custom_call.1} parent=27 // pred_fallthru
          _
        // Predicated region
        $region33: #{tpu_custom_call.1} parent=27 // pred_check
          %p183 = pneg %p76
        $region34: #{tpu_custom_call.1} parent=27 // pred_check_branch
          %185 = sbr.rel (%p183) target = $region36
        $region35: #{tpu_custom_call.1} parent=27 // pred_region
          %186 = dma.done [#allocation7], 64
        $region36: #{tpu_custom_call.1} parent=27 // pred_fallthru
          _
        %s187 = sand.u32 %s42, 1
        %s188 = scalar_lea.sflag [#allocation4], %s187
        %s189 = sand.u32 %s42, 1
        %s190 = smul.addr %s189, 512
        %s191 = scalar_lea.vmem [#allocation3], %s190
        %p192 = pneg %p55
        %p193 = pneg %p52
        %p194 = pneg %p76
        %p195 = pneg %p73
        %p196 = pneg %p102
        %p197 = pneg %p99
        %s198 = sand.u32 %s89, 1
        %s199 = scalar_lea.sflag [#allocation5], %s198
        %s200 = sand.u32 %s89, 1
        %s201 = smul.addr %s200, 2
        %s202 = scalar_lea.vmem [#allocation8], %s201
        %s203 = smul.u32 32, %s24
        %s204 = smul.u32 2, %s25
        %s205 = ssub.s32 63, %s203
        %p206 = scmp.lt.s32.totalorder %s205, 32
        %s207 = scalar_select %p206, %s205, 32
        %s208 = smul.u32 128, %s207
        %s209 = ssub.s32 3, %s204
        %p210 = scmp.lt.s32.totalorder %s209, 2
        %s211 = scalar_select %p210, %s209, 2
        %s212 = smul.u32 %s208, %s211
        %s213 = smul.u32 2, %s24
        %p214 = scmp.eq.s32.totalorder %s25, 0
        // Predicated region
        $region37: #{tpu_custom_call.1} parent=27 // pred_check
          %p215 = pneg %p214
        $region38: #{tpu_custom_call.1} parent=27 // pred_check_branch
          %217 = sbr.rel (%p215) target = $region40
        $region39: #{tpu_custom_call.1} parent=27 // pred_region
          %v218 = vlaneseq
          %vm219 = vcmp.ge.s32.totalorder %v218, 0
          %vm220 = vcmp.lt.s32.totalorder %v218, 256
          %vm221 = vmand %vm219, %vm220
          %222 = vst.msk [vmem:[#allocation2] sm:$0x3] %vm221, 0.0
        $region40: #{tpu_custom_call.1} parent=27 // pred_fallthru
          _
        %s223 = smul.u32 %s25, 256
        %s224 = sshra.s32 %s223, 7
        %s225 = sand.u32 %s223, 127
        %s226 = scalar_lea.vmem [#allocation6], %s224
        %v227 = vld [vmem:[%s226] sm:$0x3]
        %v228 = vld [vmem:[%s178] sm:$0xff]
        %v229 = vld [vmem:[%s178 + $0x8] sm:$0xff]
        %v230 = vld [vmem:[%s178 + $0x10] sm:$0xff]
        %v231 = vld [vmem:[%s178 + $0x18] sm:$0xff]
        %v232 = vld [vmem:[%s178 + $0x20] sm:$0xff]
        %v233 = vld [vmem:[%s178 + $0x28] sm:$0xff]
        %v234 = vld [vmem:[%s178 + $0x30] sm:$0xff]
        %v235 = vld [vmem:[%s178 + $0x38] sm:$0xff]
        %v236 = vld [vmem:[%s178 + $0x40] sm:$0xff]
        %v237 = vld [vmem:[%s178 + $0x48] sm:$0xff]
        %v238 = vld [vmem:[%s178 + $0x50] sm:$0xff]
        %v239 = vld [vmem:[%s178 + $0x58] sm:$0xff]
        %v240 = vld [vmem:[%s178 + $0x60] sm:$0xff]
        %v241 = vld [vmem:[%s178 + $0x68] sm:$0xff]
        %v242 = vld [vmem:[%s178 + $0x70] sm:$0xff]
        %v243 = vld [vmem:[%s178 + $0x78] sm:$0xff]
        %v244 = vld [vmem:[%s178 + $0x80] sm:$0xff]
        %v245 = vld [vmem:[%s178 + $0x88] sm:$0xff]
        %v246 = vld [vmem:[%s178 + $0x90] sm:$0xff]
        %v247 = vld [vmem:[%s178 + $0x98] sm:$0xff]
        %v248 = vld [vmem:[%s178 + $0xa0] sm:$0xff]
        %v249 = vld [vmem:[%s178 + $0xa8] sm:$0xff]
        %v250 = vld [vmem:[%s178 + $0xb0] sm:$0xff]
        %v251 = vld [vmem:[%s178 + $0xb8] sm:$0xff]
        %v252 = vld [vmem:[%s178 + $0xc0] sm:$0xff]
        %v253 = vld [vmem:[%s178 + $0xc8] sm:$0xff]
        %v254 = vld [vmem:[%s178 + $0xd0] sm:$0xff]
        %v255 = vld [vmem:[%s178 + $0xd8] sm:$0xff]
        %v256 = vld [vmem:[%s178 + $0xe0] sm:$0xff]
        %v257 = vld [vmem:[%s178 + $0xe8] sm:$0xff]
        %v258 = vld [vmem:[%s178 + $0xf0] sm:$0xff]
        %v259 = vld [vmem:[%s178 + $0xf8] sm:$0xff]
        %v260 = vld [vmem:[%s178 + $0x100] sm:$0xff]
        %v261 = vld [vmem:[%s178 + $0x108] sm:$0xff]
        %v262 = vld [vmem:[%s178 + $0x110] sm:$0xff]
        %v263 = vld [vmem:[%s178 + $0x118] sm:$0xff]
        %v264 = vld [vmem:[%s178 + $0x120] sm:$0xff]
        %v265 = vld [vmem:[%s178 + $0x128] sm:$0xff]
        %v266 = vld [vmem:[%s178 + $0x130] sm:$0xff]
        %v267 = vld [vmem:[%s178 + $0x138] sm:$0xff]
        %v268 = vld [vmem:[%s178 + $0x140] sm:$0xff]
        %v269 = vld [vmem:[%s178 + $0x148] sm:$0xff]
        %v270 = vld [vmem:[%s178 + $0x150] sm:$0xff]
        %v271 = vld [vmem:[%s178 + $0x158] sm:$0xff]
        %v272 = vld [vmem:[%s178 + $0x160] sm:$0xff]
        %v273 = vld [vmem:[%s178 + $0x168] sm:$0xff]
        %v274 = vld [vmem:[%s178 + $0x170] sm:$0xff]
        %v275 = vld [vmem:[%s178 + $0x178] sm:$0xff]
        %v276 = vld [vmem:[%s178 + $0x180] sm:$0xff]
        %v277 = vld [vmem:[%s178 + $0x188] sm:$0xff]
        %v278 = vld [vmem:[%s178 + $0x190] sm:$0xff]
        %v279 = vld [vmem:[%s178 + $0x198] sm:$0xff]
        %v280 = vld [vmem:[%s178 + $0x1a0] sm:$0xff]
        %v281 = vld [vmem:[%s178 + $0x1a8] sm:$0xff]
        %v282 = vld [vmem:[%s178 + $0x1b0] sm:$0xff]
        %v283 = vld [vmem:[%s178 + $0x1b8] sm:$0xff]
        %v284 = vld [vmem:[%s178 + $0x1c0] sm:$0xff]
        %v285 = vld [vmem:[%s178 + $0x1c8] sm:$0xff]
        %v286 = vld [vmem:[%s178 + $0x1d0] sm:$0xff]
        %v287 = vld [vmem:[%s178 + $0x1d8] sm:$0xff]
        %v288 = vld [vmem:[%s178 + $0x1e0] sm:$0xff]
        %v289 = vld [vmem:[%s178 + $0x1e8] sm:$0xff]
        %v290 = vld [vmem:[%s178 + $0x1f0] sm:$0xff]
        %v291 = vld [vmem:[%s178 + $0x1f8] sm:$0xff]
        %v292 = vlaneseq
        %v293 = vand.u32 %v292, 127
        %v294 = vadd.s32 %v293, 128
        %v295 = vstv %s223
        %v296 = vadd.s32 %v295, %v293
        %v297 = vadd.s32 %v295, %v294
        %vm298 = vcmp.lt.s32.totalorder %v296, 384
        %vm299 = vcmp.lt.s32.totalorder %v297, 384
        %v300 = vsel %vm298, 1, 0
        %v301 = vsel %vm299, 1, 0
        %vm302 = vcmp.eq.s32.totalorder %v300, 1
        %vm303 = vcmp.eq.s32.totalorder %v301, 1
        %v304 = vsel %vm302, %v228, 0.0
        %v305 = vsel %vm303, %v229, 0.0
        %v306 = vsel %vm302, %v230, 0.0
        %v307 = vsel %vm303, %v231, 0.0
        %v308 = vsel %vm302, %v232, 0.0
        %v309 = vsel %vm303, %v233, 0.0
        %v310 = vsel %vm302, %v234, 0.0
        %v311 = vsel %vm303, %v235, 0.0
        %v312 = vsel %vm302, %v236, 0.0
        %v313 = vsel %vm303, %v237, 0.0
        %v314 = vsel %vm302, %v238, 0.0
        %v315 = vsel %vm303, %v239, 0.0
        %v316 = vsel %vm302, %v240, 0.0
        %v317 = vsel %vm303, %v241, 0.0
        %v318 = vsel %vm302, %v242, 0.0
        %v319 = vsel %vm303, %v243, 0.0
        %v320 = vsel %vm302, %v244, 0.0
        %v321 = vsel %vm303, %v245, 0.0
        %v322 = vsel %vm302, %v246, 0.0
        %v323 = vsel %vm303, %v247, 0.0
        %v324 = vsel %vm302, %v248, 0.0
        %v325 = vsel %vm303, %v249, 0.0
        %v326 = vsel %vm302, %v250, 0.0
        %v327 = vsel %vm303, %v251, 0.0
        %v328 = vsel %vm302, %v252, 0.0
        %v329 = vsel %vm303, %v253, 0.0
        %v330 = vsel %vm302, %v254, 0.0
        %v331 = vsel %vm303, %v255, 0.0
        %v332 = vsel %vm302, %v256, 0.0
        %v333 = vsel %vm303, %v257, 0.0
        %v334 = vsel %vm302, %v258, 0.0
        %v335 = vsel %vm303, %v259, 0.0
        %v336 = vsel %vm302, %v260, 0.0
        %v337 = vsel %vm303, %v261, 0.0
        %v338 = vsel %vm302, %v262, 0.0
        %v339 = vsel %vm303, %v263, 0.0
        %v340 = vsel %vm302, %v264, 0.0
        %v341 = vsel %vm303, %v265, 0.0
        %v342 = vsel %vm302, %v266, 0.0
        %v343 = vsel %vm303, %v267, 0.0
        %v344 = vsel %vm302, %v268, 0.0
        %v345 = vsel %vm303, %v269, 0.0
        %v346 = vsel %vm302, %v270, 0.0
        %v347 = vsel %vm303, %v271, 0.0
        %v348 = vsel %vm302, %v272, 0.0
        %v349 = vsel %vm303, %v273, 0.0
        %v350 = vsel %vm302, %v274, 0.0
        %v351 = vsel %vm303, %v275, 0.0
        %v352 = vsel %vm302, %v276, 0.0
        %v353 = vsel %vm303, %v277, 0.0
        %v354 = vsel %vm302, %v278, 0.0
        %v355 = vsel %vm303, %v279, 0.0
        %v356 = vsel %vm302, %v280, 0.0
        %v357 = vsel %vm303, %v281, 0.0
        %v358 = vsel %vm302, %v282, 0.0
        %v359 = vsel %vm303, %v283, 0.0
        %v360 = vsel %vm302, %v284, 0.0
        %v361 = vsel %vm303, %v285, 0.0
        %v362 = vsel %vm302, %v286, 0.0
        %v363 = vsel %vm303, %v287, 0.0
        %v364 = vsel %vm302, %v288, 0.0
        %v365 = vsel %vm303, %v289, 0.0
        %v366 = vsel %vm302, %v290, 0.0
        %v367 = vsel %vm303, %v291, 0.0
        %v368 = vld [vmem:[#allocation2] sm:$0x3]
        %v370 = vlaneseq
        %v371 = vshrl.u32 %v370, 7
        %v372 = vsub.s32 0, %v371
        %v373 = vrot.slane %v227, %v372
        %v374 = vlaneseq
        %v375 = vshrl.u32 %v374, 7
        %v376 = vsub.s32 1, %v375
        %v377 = vrot.slane %v227, %v376
        %380 = vmatprep.subr.mxu0 %v305
        %381 = vmatpush1.xpose.msra.mxu0 %v304
        %382 = vmatprep.subr.mxu0 %v307
        %383 = vmatpush1.xpose.msra.mxu0 %v306
        %384 = vmatprep.subr.mxu0 %v309
        %385 = vmatpush1.xpose.msra.mxu0 %v308
        %386 = vmatprep.subr.mxu0 %v311
        %387 = vmatpush1.xpose.msra.mxu0 %v310
        %388 = vmatprep.subr.mxu0 %v313
        %389 = vmatpush1.xpose.msra.mxu0 %v312
        %390 = vmatprep.subr.mxu0 %v315
        %391 = vmatpush1.xpose.msra.mxu0 %v314
        %392 = vmatprep.subr.mxu0 %v317
        %393 = vmatpush1.xpose.msra.mxu0 %v316
        %394 = vmatprep.subr.mxu0 %v319
        %395 = vmatpush1.xpose.msra.mxu0 %v318
        %396 = vmatprep.subr.mxu0 %v321
        %397 = vmatpush1.xpose.msra.mxu0 %v320
        %398 = vmatprep.subr.mxu0 %v323
        %399 = vmatpush1.xpose.msra.mxu0 %v322
        %400 = vmatprep.subr.mxu0 %v325
        %401 = vmatpush1.xpose.msra.mxu0 %v324
        %402 = vmatprep.subr.mxu0 %v327
        %403 = vmatpush1.xpose.msra.mxu0 %v326
        %404 = vmatprep.subr.mxu0 %v329
        %405 = vmatpush1.xpose.msra.mxu0 %v328
        %406 = vmatprep.subr.mxu0 %v331
        %407 = vmatpush1.xpose.msra.mxu0 %v330
        %408 = vmatprep.subr.mxu0 %v333
        %409 = vmatpush1.xpose.msra.mxu0 %v332
        %410 = vmatprep.subr.mxu0 %v335
        %411 = vmatpush1.xpose.msra.mxu0 %v334
        %412 = vmatprep.subr.mxu0 %v337
        %413 = vmatpush1.xpose.msra.mxu0 %v336
        %414 = vmatprep.subr.mxu0 %v339
        %415 = vmatpush1.xpose.msra.mxu0 %v338
        %416 = vmatprep.subr.mxu0 %v341
        %417 = vmatpush1.xpose.msra.mxu0 %v340
        %418 = vmatprep.subr.mxu0 %v343
        %419 = vmatpush1.xpose.msra.mxu0 %v342
        %420 = vmatprep.subr.mxu0 %v345
        %421 = vmatpush1.xpose.msra.mxu0 %v344
        %422 = vmatprep.subr.mxu0 %v347
        %423 = vmatpush1.xpose.msra.mxu0 %v346
        %424 = vmatprep.subr.mxu0 %v349
        %425 = vmatpush1.xpose.msra.mxu0 %v348
        %426 = vmatprep.subr.mxu0 %v351
        %427 = vmatpush1.xpose.msra.mxu0 %v350
        %428 = vmatprep.subr.mxu0 %v353
        %429 = vmatpush1.xpose.msra.mxu0 %v352
        %430 = vmatprep.subr.mxu0 %v355
        %431 = vmatpush1.xpose.msra.mxu0 %v354
        %432 = vmatprep.subr.mxu0 %v357
        %433 = vmatpush1.xpose.msra.mxu0 %v356
        %434 = vmatprep.subr.mxu0 %v359
        %435 = vmatpush1.xpose.msra.mxu0 %v358
        %436 = vmatprep.subr.mxu0 %v361
        %437 = vmatpush1.xpose.msra.mxu0 %v360
        %438 = vmatprep.subr.mxu0 %v363
        %439 = vmatpush1.xpose.msra.mxu0 %v362
        %440 = vmatprep.subr.mxu0 %v365
        %441 = vmatpush1.xpose.msra.mxu0 %v364
        %442 = vmatprep.subr.mxu0 %v367
        %443 = vmatpush1.xpose.msra.mxu0 %v366
        %444 = vmatprep.mubr.f32.mxu0 %v377
        %445 = vmatmul.mubr.f32.gmra.mrb[0].mxu0 %v373
        %v446 = vpop.f32.mrb[0].mxu0
        %v447 = vadd.f32 0.0, %v446
        %v448 = vpop.f32.mrb[0].mxu0
        %v449 = vadd.f32 0.0, %v448
        %450 = vdwg.mxu0
        %v453 = vcombine.low %v447, %v449
        %v455 = vunpack.c.l.s4 1966171168
        %v456 = vunpack.c.0.s8 %v455
        %v457 = vlaneseq
        %v458 = vshrl.u32 %v457, 7
        %v459 = vsub.s32 %v456, %v458
        %v460 = vrot.slane %v453, %v459
        %v462 = vunpack.c.l.s4 1966171168
        %v463 = vunpack.c.0.s8 %v462
        %v464 = vlaneseq
        %v465 = vshrl.u32 %v464, 7
        %v466 = vsub.s32 %v463, %v465
        %v467 = vrot.slane %v460, %v466
        %v469 = vadd.f32 %v368, %v467
        %v470 = vlaneseq
        %vm471 = vcmp.ge.s32.totalorder %v470, 0
        %vm472 = vcmp.lt.s32.totalorder %v470, 256
        %vm473 = vmand %vm471, %vm472
        %474 = vst.msk [vmem:[#allocation2] sm:$0x3] %vm473, %v469
        %p475 = scmp.eq.s32.totalorder %s25, 1
        // Predicated region
        $region41: #{tpu_custom_call.1} parent=27 // pred_check
          %p476 = pneg %p475
        $region42: #{tpu_custom_call.1} parent=27 // pred_check_branch
          %478 = sbr.rel (%p476) target = $region44
        $region43: #{tpu_custom_call.1} parent=27 // pred_region
          %v479 = vld [vmem:[#allocation2] sm:$0x3]
          %480 = vst.msk [vmem:[%s202] sm:$0x3] %vm473, %v479
        $region44: #{tpu_custom_call.1} parent=27 // pred_fallthru
          _
        %s481 = sand.u32 %s89, 1
        %s482 = scalar_lea.sflag [#allocation5], %s481
        %s483 = sand.u32 %s89, 1
        %s484 = smul.addr %s483, 2
        %s485 = scalar_lea.vmem [#allocation8], %s484
        // Predicated region
        $region45: #{tpu_custom_call.1} parent=27 // pred_check
          %p486 = pneg %p99
        $region46: #{tpu_custom_call.1} parent=27 // pred_check_branch
          %488 = sbr.rel (%p486) target = $region48
        $region47: #{tpu_custom_call.1} parent=27 // pred_region
          %s489 = smul.u32 2, %s24
          %s491 = ssub.s32 32, 32
          %492 = vsyncadd %s482, %s491
          %s493 = smul.addr %s489, 16
          %s494 = scalar_lea.hbm %s2, %s493
          %s496 = sshll.u32 %s485, 4
          %s497 = int_to_ptr.vmem [resolvable:$true] %s496
          %499 = dma.vmem_to_hbm [thread:$0]  %s497, 32, %s494, %s482
        $region48: #{tpu_custom_call.1} parent=27 // pred_fallthru
          _
      $region28: #{tpu_custom_call.1} parent=5 // pred_fallthru
        _
      %p500 = scmp.le.s32.totalorder 2, %s15
      // Predicated region
      $region49: #{tpu_custom_call.1} parent=5 // pred_check
        %p501 = pneg %p500
      $region50: #{tpu_custom_call.1} parent=5 // pred_check_branch
        %503 = sbr.rel (%p501) target = $region52
      $region51: #{tpu_custom_call.1} parent=5 // pred_region
        %s504 = ssub.s32 %s15, 2
        // Predicated region
        $region53: #{tpu_custom_call.1} parent=51 // pred_check
          %p505 = pneg %p105
        $region54: #{tpu_custom_call.1} parent=51 // pred_check_branch
          %507 = sbr.rel (%p505) target = $region56
        $region55: #{tpu_custom_call.1} parent=51 // pred_region
          %s508 = sand.u32 %s90, 1
          %s509 = scalar_lea.sflag [#allocation5], %s508
          %s510 = sand.u32 %s90, 1
          %s511 = smul.addr %s510, 2
          %s512 = scalar_lea.vmem [#allocation8], %s511
          %513 = dma.done %s509, 32
        $region56: #{tpu_custom_call.1} parent=51 // pred_fallthru
          _
      $region52: #{tpu_custom_call.1} parent=5 // pred_fallthru
        _
    $region6: #{tpu_custom_call.1} parent=1 // loop_footer
      %s19 = sadd.s32 1, %s15
    $region7: #{tpu_custom_call.1} parent=1 // loop_footer_branch
      %14 = sbr.rel target = $region3
    $region8: #{tpu_custom_call.1} parent=1 // loop_exit
      _
    %514 = vsyncpa [#allocation4], 1
    %s515 = scalar_lea.sflag [#allocation4], 1
    %516 = vsyncpa %s515, 1
    %517 = vsyncpa [#allocation7], 1
    %518 = vsyncpa [#allocation5], 1
    %s519 = scalar_lea.sflag [#allocation5], 1
    %520 = vsyncpa %s519, 1

</llo_original>
